<compile_context>
chip_gen: v6e
topology: v6e:2x2x1
jax: 0.10.0
libtpu: 0.0.40
codegen_flags: <defaults>
</compile_context>

<pallas_src>
import jax
import jax.numpy as jnp
from jax import lax
from jax.experimental import pallas as pl
from jax.experimental.pallas import tpu as pltpu


def _pick_batch_tile(b, npad, target_bytes=1 << 20):
    """Rows per grid step: ~1 MiB per input per step, multiple of 8, <= padded batch."""
    tb = (target_bytes // (npad * 4)) // 8 * 8
    tb = max(8, min(tb, 1024))
    b_up = pl.cdiv(b, 8) * 8
    return min(tb, b_up)


def combined_heatmap_binary_loss(hm_outputs, hm_targets, cls_preds, cls_gts):
    """Forward pass of CombinedHeatmapBinaryLoss.

    hm_outputs: (B, 1, H, W) heatmap logits (sigmoid + clamp applied in-kernel).
    hm_targets: (B, H, W, K) heatmap targets; channel 0 is used (as in the torch code).
    cls_preds : (B, 1) probabilities.   cls_gts: (B, 1) binary labels.
    Returns {'hm': scalar, 'cls': scalar}.
    """
    B, C, H, W = hm_outputs.shape
    assert C == 1, "per-pixel BCE against a (B,1) target requires a single heatmap channel"
    N = H * W

    # ---- wrapper-side layout plumbing: lane-dense (B, H*W) slabs ----------------------
    pred2 = hm_outputs.reshape(B, N)
    gt2 = hm_targets[..., 0].reshape(B, N)

    NPAD = pl.cdiv(N, 128) * 128
    TB = _pick_batch_tile(B, NPAD)
    n_tiles = pl.cdiv(B, TB)
    NC = 2 if n_tiles >= 2 else 1          # split batch tiles across 2 TCs (helps v7x)
    n_inner = pl.cdiv(n_tiles, NC)
    BPAD = NC * n_inner * TB

    if BPAD != B or NPAD != N:
        pred2 = jnp.pad(pred2, ((0, BPAD - B), (0, NPAD - N)))
        gt2 = jnp.pad(gt2, ((0, BPAD - B), (0, NPAD - N)))

    clsp = cls_preds.reshape(cls_preds.shape[0], -1).astype(jnp.float32)
    clsy = cls_gts.reshape(cls_gts.shape[0], -1).astype(jnp.float32)
    n_cls = clsp.shape[0] * clsp.shape[1]

    need_row_mask = BPAD != B
    need_col_mask = NPAD != N

    def kernel(pred_ref, gt_ref, clsp_ref, clsy_ref, hm_ref, cls_ref, acc_ref):
        c = pl.program_id(0)
        i = pl.program_id(1)

        @pl.when(i == 0)
        def _():
            acc_ref[...] = jnp.zeros_like(acc_ref)

        x = pred_ref[...].astype(jnp.float32)        # (TB, NPAD) logits
        y = gt_ref[...].astype(jnp.float32)          # (TB, NPAD) targets

        # _sigmoid(): clamp(sigmoid(x), 1e-4, 1 - 1e-4)
        p = 1.0 / (1.0 + jnp.exp(-x))
        p = jnp.clip(p, 1e-4, 1.0 - 1e-4)
        # Element-wise BCE. log(p) >= log(1e-4) after the clamp, so torch's -100
        # log-clamp is a no-op here and is omitted.
        loss = -(y * jnp.log(p) + (1.0 - y) * jnp.log(1.0 - p))

        if need_row_mask or need_col_mask:
            valid = None
            if need_row_mask:
                row0 = (c * n_inner + i) * TB
                rows = lax.broadcasted_iota(jnp.int32, (TB, NPAD), 0) + row0
                valid = rows < B
            if need_col_mask:
                cols = lax.broadcasted_iota(jnp.int32, (TB, NPAD), 1)
                cmask = cols < N
                valid = cmask if valid is None else (valid & cmask)
            loss = jnp.where(valid, loss, 0.0)

        # Deferred reduction: element-wise (VPU) accumulation every step; the single
        # cross-lane/sublane reduce happens only at the last inner step.
        acc_ref[...] = acc_ref[...] + loss

        @pl.when(i == n_inner - 1)
        def _():
            hm_ref[...] = jnp.sum(acc_ref[...]).reshape(1, 1)
            # Fused classification BCE (tiny; avoids a second pallas_call launch).
            cp = clsp_ref[...].astype(jnp.float32)
            cy = clsy_ref[...].astype(jnp.float32)
            lp = jnp.maximum(jnp.log(cp), -100.0)       # torch BCELoss log clamp
            l1p = jnp.maximum(jnp.log(1.0 - cp), -100.0)
            cls_ref[...] = (jnp.sum(-(cy * lp + (1.0 - cy) * l1p))
                            / jnp.float32(n_cls)).reshape(1, 1)

    def hm_in_spec():
        idx = lambda c, i: (c * n_inner + i, 0)
        if n_inner >= 3:
            # Deeper input pipelining only pays off with a long inner grid (v7x HBM).
            return pl.BlockSpec((TB, NPAD), idx, pipeline_mode=pl.Buffered(3))
        return pl.BlockSpec((TB, NPAD), idx)

    cost = pl.CostEstimate(
        flops=10 * BPAD * NPAD,
        transcendentals=3 * BPAD * NPAD,
        bytes_accessed=2 * BPAD * NPAD * 4 + 2 * 4 * n_cls + 8 * NC,
    )

    hm_partials, cls_partials = pl.pallas_call(
        kernel,
        out_shape=(jax.ShapeDtypeStruct((NC, 1), jnp.float32),
                   jax.ShapeDtypeStruct((NC, 1), jnp.float32)),
        grid_spec=pltpu.PrefetchScalarGridSpec(
            num_scalar_prefetch=0,
            grid=(NC, n_inner),
            in_specs=[
                hm_in_spec(),
                hm_in_spec(),
                pl.BlockSpec(clsp.shape, lambda c, i: (0, 0)),
                pl.BlockSpec(clsy.shape, lambda c, i: (0, 0)),
            ],
            out_specs=[
                pl.BlockSpec((1, 1), lambda c, i: (c, 0)),
                pl.BlockSpec((1, 1), lambda c, i: (c, 0)),
            ],
            scratch_shapes=[pltpu.VMEM((TB, NPAD), jnp.float32)],
        ),
        compiler_params=pltpu.CompilerParams(
            dimension_semantics=("parallel", "arbitrary"),
            vmem_limit_bytes=32 * 1024 * 1024),
        cost_estimate=cost,
    )(pred2, gt2, clsp, clsy)

    loss_hm = jnp.sum(hm_partials) / jnp.float32(B * H * W)
    loss_cls = cls_partials[0, 0]
    return {"hm": loss_hm, "cls": loss_cls}


if __name__ == "__main__":
    key = jax.random.PRNGKey(0)
    k1, k2, k3, k4 = jax.random.split(key, 4)

    B, H, W = 2, 16, 16

    # Heatmap logits (sigmoid is applied inside the loss, as in the PyTorch module)
    # and (B, H, W, K) targets in [0, 1]; channel 0 is the heatmap target.
    hm_outputs = jax.random.normal(k1, (B, 1, H, W), dtype=jnp.float32)
    hm_targets = jax.random.uniform(k2, (B, H, W, 2), dtype=jnp.float32)

    # Classification probabilities and binary ground truth.
    cls_preds = jax.nn.sigmoid(jax.random.normal(k3, (B, 1), dtype=jnp.float32))
    cls_gts = (jax.random.uniform(k4, (B, 1)) > 0.5).astype(jnp.float32)

    losses = combined_heatmap_binary_loss(hm_outputs, hm_targets, cls_preds, cls_gts)
    losses = jax.tree_util.tree_map(jax.block_until_ready, losses)

    # Pure-JAX reference (same math as the PyTorch forward).
    p = jnp.clip(1.0 / (1.0 + jnp.exp(-hm_outputs)), 1e-4, 1.0 - 1e-4)
    y = hm_targets[..., 0][:, None, :, :]
    ref_hm = jnp.mean(-(y * jnp.maximum(jnp.log(p), -100.0)
                        + (1.0 - y) * jnp.maximum(jnp.log(1.0 - p), -100.0)))
    ref_cls = jnp.mean(-(cls_gts * jnp.maximum(jnp.log(cls_preds), -100.0)
                         + (1.0 - cls_gts) * jnp.maximum(jnp.log(1.0 - cls_preds), -100.0)))

    assert jnp.allclose(losses["hm"], ref_hm, rtol=1e-5, atol=1e-6), (losses["hm"], ref_hm)
    assert jnp.allclose(losses["cls"], ref_cls, rtol=1e-5, atol=1e-6), (losses["cls"], ref_cls)

    print("KERNEL_OK")
</pallas_src>

<mosaic_0001>
module attributes {stable_mosaic.version = 11 : i64} {
  func.func @kernel(%arg0: i32, %arg1: i32, %arg2: memref<8x256xf32, #tpu.memory_space<vmem>>, %arg3: memref<8x256xf32, #tpu.memory_space<vmem>>, %arg4: memref<2x1xf32, #tpu.memory_space<vmem>>, %arg5: memref<2x1xf32, #tpu.memory_space<vmem>>, %arg6: memref<1x1xf32, #tpu.memory_space<vmem>>, %arg7: memref<1x1xf32, #tpu.memory_space<vmem>>, %arg8: memref<8x256xf32, #tpu.memory_space<vmem>>) attributes {dimension_semantics = [#tpu.dimension_semantics<parallel>, #tpu.dimension_semantics<arbitrary>], iteration_bounds = array<i64: 1, 1>, scalar_prefetch = 0 : i64, scratch_operands = 1 : i64, tpu.core_type = #tpu.core_type<tc>, window_params = [{transform_indices = @transform_0, window_bounds = array<i64: 8, 256>}, {transform_indices = @transform_1, window_bounds = array<i64: 8, 256>}, {pipeline_mode = #tpu.pipeline_mode<synchronous>, transform_indices = @transform_2, window_bounds = array<i64: 2, 1>}, {pipeline_mode = #tpu.pipeline_mode<synchronous>, transform_indices = @transform_3, window_bounds = array<i64: 2, 1>}, {transform_indices = @transform_4, window_bounds = array<i64: 1, 1>}, {transform_indices = @transform_5, window_bounds = array<i64: 1, 1>}]} {
    %c0_i32 = arith.constant 0 : i32
    %0 = arith.cmpi eq, %arg1, %c0_i32 : i32
    %1 = arith.extui %0 : i1 to i32
    %c0_i32_0 = arith.constant 0 : i32
    %2 = arith.cmpi ne, %1, %c0_i32_0 : i32
    scf.if %2 {
      %cst_18 = arith.constant 0.000000e+00 : f32
      %43 = vector.broadcast %cst_18 : f32 to vector<8x256xf32>
      %c0_19 = arith.constant 0 : index
      %c0_20 = arith.constant 0 : index
      %44 = vector.load %arg8[%c0_19, %c0_20] : memref<8x256xf32, #tpu.memory_space<vmem>>, vector<8x256xf32>
      tpu.vector_store %arg8[%c0_19, %c0_20], %43 {strides = array<i32>} : memref<8x256xf32, #tpu.memory_space<vmem>>, vector<8x256xf32>,
    } else {
    }
    %c0 = arith.constant 0 : index
    %c0_1 = arith.constant 0 : index
    %3 = vector.load %arg2[%c0, %c0_1] : memref<8x256xf32, #tpu.memory_space<vmem>>, vector<8x256xf32>
    %c0_2 = arith.constant 0 : index
    %c0_3 = arith.constant 0 : index
    %4 = vector.load %arg3[%c0_2, %c0_3] : memref<8x256xf32, #tpu.memory_space<vmem>>, vector<8x256xf32>
    %cst = arith.constant 0.000000e+00 : f32
    %5 = vector.broadcast %cst : f32 to vector<8x256xf32>
    %6 = arith.subf %5, %3 : vector<8x256xf32>
    %7 = math.exp %6 : vector<8x256xf32>
    %cst_4 = arith.constant 1.000000e+00 : f32
    %8 = vector.broadcast %cst_4 : f32 to vector<8x256xf32>
    %9 = arith.addf %8, %7 : vector<8x256xf32>
    %cst_5 = arith.constant 1.000000e+00 : f32
    %10 = vector.broadcast %cst_5 : f32 to vector<8x256xf32>
    %11 = arith.divf %10, %9 : vector<8x256xf32>
    %cst_6 = arith.constant 9.99999974E-5 : f32
    %cst_7 = arith.constant 0.999899983 : f32
    %12 = vector.broadcast %cst_6 : f32 to vector<8x256xf32>
    %13 = arith.maximumf %12, %11 : vector<8x256xf32>
    %14 = vector.broadcast %cst_7 : f32 to vector<8x256xf32>
    %15 = arith.minimumf %14, %13 : vector<8x256xf32>
    %16 = math.log %15 : vector<8x256xf32>
    %17 = arith.mulf %4, %16 : vector<8x256xf32>
    %cst_8 = arith.constant 1.000000e+00 : f32
    %18 = vector.broadcast %cst_8 : f32 to vector<8x256xf32>
    %19 = arith.subf %18, %4 : vector<8x256xf32>
    %cst_9 = arith.constant 1.000000e+00 : f32
    %20 = vector.broadcast %cst_9 : f32 to vector<8x256xf32>
    %21 = arith.subf %20, %15 : vector<8x256xf32>
    %22 = math.log %21 : vector<8x256xf32>
    %23 = arith.mulf %19, %22 : vector<8x256xf32>
    %24 = arith.addf %17, %23 : vector<8x256xf32>
    %cst_10 = arith.constant 0.000000e+00 : f32
    %25 = vector.broadcast %cst_10 : f32 to vector<8x256xf32>
    %26 = arith.subf %25, %24 : vector<8x256xf32>
    %c1_i32 = arith.constant 1 : i32
    %27 = arith.muli %arg0, %c1_i32 : i32
    %28 = arith.addi %27, %arg1 : i32
    %c8_i32 = arith.constant 8 : i32
    %29 = arith.muli %28, %c8_i32 : i32
    %30 = tpu.iota {dimensions = array<i32: 0>} : vector<8x256xi32>
    %31 = vector.broadcast %29 : i32 to vector<8x256xi32>
    %32 = arith.addi %30, %31 : vector<8x256xi32>
    %c2_i32 = arith.constant 2 : i32
    %33 = vector.broadcast %c2_i32 : i32 to vector<8x256xi32>
    %34 = arith.cmpi slt, %32, %33 : vector<8x256xi32>
    %cst_11 = arith.constant 0.000000e+00 : f32
    %35 = vector.broadcast %cst_11 : f32 to vector<8x256xf32>
    %36 = arith.select %34, %26, %35 : vector<8x256xi1>, vector<8x256xf32>
    %c0_12 = arith.constant 0 : index
    %c0_13 = arith.constant 0 : index
    %37 = vector.load %arg8[%c0_12, %c0_13] : memref<8x256xf32, #tpu.memory_space<vmem>>, vector<8x256xf32>
    %38 = arith.addf %37, %36 : vector<8x256xf32>
    %c0_14 = arith.constant 0 : index
    %c0_15 = arith.constant 0 : index
    %39 = vector.load %arg8[%c0_14, %c0_15] : memref<8x256xf32, #tpu.memory_space<vmem>>, vector<8x256xf32>
    tpu.vector_store %arg8[%c0_14, %c0_15], %38 {strides = array<i32>} : memref<8x256xf32, #tpu.memory_space<vmem>>, vector<8x256xf32>,
    %c0_i32_16 = arith.constant 0 : i32
    %40 = arith.cmpi eq, %arg1, %c0_i32_16 : i32
    %41 = arith.extui %40 : i1 to i32
    %c0_i32_17 = arith.constant 0 : i32
    %42 = arith.cmpi ne, %41, %c0_i32_17 : i32
    scf.if %42 {
      %c0_18 = arith.constant 0 : index
      %c0_19 = arith.constant 0 : index
      %43 = vector.load %arg8[%c0_18, %c0_19] : memref<8x256xf32, #tpu.memory_space<vmem>>, vector<8x256xf32>
      %44 = vector.shape_cast %43 : vector<8x256xf32> to vector<1x8x256xf32>
      %cst_20 = arith.constant dense<0.000000e+00> : vector<1xf32>
      %45 = vector.multi_reduction <add>, %44, %cst_20 [1, 2] : vector<1x8x256xf32> to vector<1xf32>
      %46 = vector.shape_cast %45 : vector<1xf32> to vector<1x1x1xf32>
      %47 = vector.extract %46[0, 0, 0] : f32 from vector<1x1x1xf32>
      %48 = vector.broadcast %47 : f32 to vector<1x1xf32>
      %c0_21 = arith.constant 0 : index
      %c0_22 = arith.constant 0 : index
      %49 = vector.load %arg6[%c0_21, %c0_22] : memref<1x1xf32, #tpu.memory_space<vmem>>, vector<1x1xf32>
      tpu.vector_store %arg6[%c0_21, %c0_22], %48 {strides = array<i32>} : memref<1x1xf32, #tpu.memory_space<vmem>>, vector<1x1xf32>,
      %c0_23 = arith.constant 0 : index
      %c0_24 = arith.constant 0 : index
      %50 = vector.load %arg4[%c0_23, %c0_24] : memref<2x1xf32, #tpu.memory_space<vmem>>, vector<2x1xf32>
      %c0_25 = arith.constant 0 : index
      %c0_26 = arith.constant 0 : index
      %51 = vector.load %arg5[%c0_25, %c0_26] : memref<2x1xf32, #tpu.memory_space<vmem>>, vector<2x1xf32>
      %52 = math.log %50 : vector<2x1xf32>
      %cst_27 = arith.constant -1.000000e+02 : f32
      %53 = vector.broadcast %cst_27 : f32 to vector<2x1xf32>
      %54 = arith.maximumf %52, %53 : vector<2x1xf32>
      %cst_28 = arith.constant 1.000000e+00 : f32
      %55 = vector.broadcast %cst_28 : f32 to vector<2x1xf32>
      %56 = arith.subf %55, %50 : vector<2x1xf32>
      %57 = math.log %56 : vector<2x1xf32>
      %cst_29 = arith.constant -1.000000e+02 : f32
      %58 = vector.broadcast %cst_29 : f32 to vector<2x1xf32>
      %59 = arith.maximumf %57, %58 : vector<2x1xf32>
      %60 = arith.mulf %51, %54 : vector<2x1xf32>
      %cst_30 = arith.constant 1.000000e+00 : f32
      %61 = vector.broadcast %cst_30 : f32 to vector<2x1xf32>
      %62 = arith.subf %61, %51 : vector<2x1xf32>
      %63 = arith.mulf %62, %59 : vector<2x1xf32>
      %64 = arith.addf %60, %63 : vector<2x1xf32>
      %cst_31 = arith.constant 0.000000e+00 : f32
      %65 = vector.broadcast %cst_31 : f32 to vector<2x1xf32>
      %66 = arith.subf %65, %64 : vector<2x1xf32>
      %67 = vector.shape_cast %66 : vector<2x1xf32> to vector<1x2x1xf32>
      %cst_32 = arith.constant dense<0.000000e+00> : vector<1xf32>
      %68 = vector.multi_reduction <add>, %67, %cst_32 [1, 2] : vector<1x2x1xf32> to vector<1xf32>
      %69 = vector.shape_cast %68 : vector<1xf32> to vector<1x1x1xf32>
      %70 = vector.extract %69[0, 0, 0] : f32 from vector<1x1x1xf32>
      %cst_33 = arith.constant 2.000000e+00 : f32
      %71 = arith.divf %70, %cst_33 : f32
      %72 = vector.broadcast %71 : f32 to vector<1x1xf32>
      %c0_34 = arith.constant 0 : index
      %c0_35 = arith.constant 0 : index
      %73 = vector.load %arg7[%c0_34, %c0_35] : memref<1x1xf32, #tpu.memory_space<vmem>>, vector<1x1xf32>
      tpu.vector_store %arg7[%c0_34, %c0_35], %72 {strides = array<i32>} : memref<1x1xf32, #tpu.memory_space<vmem>>, vector<1x1xf32>,
    } else {
    }
    return
  }
  func.func @transform_0(%arg0: i32, %arg1: i32) -> (i32, i32) {
    %c1_i32 = arith.constant 1 : i32
    %0 = arith.muli %arg0, %c1_i32 : i32
    %1 = arith.addi %0, %arg1 : i32
    %c0_i32 = arith.constant 0 : i32
    %c0_i32_0 = arith.constant 0 : i32
    return %1, %c0_i32 : i32, i32
  }
  func.func @transform_1(%arg0: i32, %arg1: i32) -> (i32, i32) {
    %c1_i32 = arith.constant 1 : i32
    %0 = arith.muli %arg0, %c1_i32 : i32
    %1 = arith.addi %0, %arg1 : i32
    %c0_i32 = arith.constant 0 : i32
    %c0_i32_0 = arith.constant 0 : i32
    return %1, %c0_i32 : i32, i32
  }
  func.func @transform_2(%arg0: i32, %arg1: i32) -> (i32, i32) {
    %c0_i32 = arith.constant 0 : i32
    %c0_i32_0 = arith.constant 0 : i32
    %c0_i32_1 = arith.constant 0 : i32
    return %c0_i32, %c0_i32_0 : i32, i32
  }
  func.func @transform_3(%arg0: i32, %arg1: i32) -> (i32, i32) {
    %c0_i32 = arith.constant 0 : i32
    %c0_i32_0 = arith.constant 0 : i32
    %c0_i32_1 = arith.constant 0 : i32
    return %c0_i32, %c0_i32_0 : i32, i32
  }
  func.func @transform_4(%arg0: i32, %arg1: i32) -> (i32, i32) {
    %c0_i32 = arith.constant 0 : i32
    %c0_i32_0 = arith.constant 0 : i32
    return %arg0, %c0_i32 : i32, i32
  }
  func.func @transform_5(%arg0: i32, %arg1: i32) -> (i32, i32) {
    %c0_i32 = arith.constant 0 : i32
    %c0_i32_0 = arith.constant 0 : i32
    return %arg0, %c0_i32 : i32, i32
  }
}

</mosaic_0001>

<llo_original>
// kernel: tpu_custom_call.1
$region0: #{tpu_custom_call.1}
  #allocation0 [shape = 'u32[]', space=smem, size = 0x4, offset = 0x4, fixed_abs, tag = 'smem constant byte address 0x4 - core index']
  #allocation1 [shape = 'u32[144,128]{1,0:T(1,128)}', space=vmem, size = 0x12000, scoped, tag = 'internal scratch']
  #allocation2 [shape = 'f32[8,256]{1,0:T(8,128)}', space=vmem, size = 0x2000, scoped, tag = 'scratch operand']
  %s0 = inlined_call_operand.hbm [shape: f32[8,256], index: 0, kind: input, shape index: {}]
  %s1 = inlined_call_operand.hbm [shape: f32[8,256], index: 1, kind: input, shape index: {}]
  %s2 = inlined_call_operand.vmem [shape: f32[2,1], index: 2, kind: input, shape index: {}]
  %s3 = inlined_call_operand.vmem [shape: f32[2,1], index: 3, kind: input, shape index: {}]
  %s4 = inlined_call_operand.hbm [shape: f32[1,1], index: 4, kind: output, shape index: {0}]
  %s5 = inlined_call_operand.hbm [shape: f32[1,1], index: 5, kind: output, shape index: {1}]
  %6 = xla_tuple %s4, %s5
  %s7 = sld [smem:[#allocation0]]
  $region50: #{tpu_custom_call.1} parent=0
    _
  %s9 = ssub.s32 1, %s7
  %s10 = scalar_select 0, %s9, %s7
  $region1: #{tpu_custom_call.1} parent=0
    #allocation3 [shape = 'u8[8192]{0}', space=vmem, size = 0x2000, scoped, tag = 'input window, operand 0, single buffered']
    #allocation4 [shape = 's32[1]{0}', space=sflag, size = 0x4, scoped, tag = 'scoped memory for tpu_custom_call.1']
    #allocation5 [shape = 's32[1]{0}', space=sflag, size = 0x4, scoped, tag = 'scoped memory for tpu_custom_call.1']
    #allocation6 [shape = 'u8[8192]{0}', space=vmem, size = 0x2000, scoped, tag = 'input window, operand 1, single buffered']
    #allocation7 [shape = 's32[1]{0}', space=sflag, size = 0x4, scoped, tag = 'scoped memory for tpu_custom_call.1']
    #allocation8 [shape = 'u8[512]{0}', space=vmem, size = 0x400, scoped, tag = 'output window, operand 0, single buffered']
    #allocation9 [shape = 'u8[512]{0}', space=vmem, size = 0x400, scoped, tag = 'output window, operand 1, single buffered']
    #allocation10 [shape = 's32[1]{0}', space=sflag, size = 0x4, scoped, tag = 'scoped memory for tpu_custom_call.1']
    %11 = vsyncpa [#allocation4], 0
    %12 = vsyncpa [#allocation7], 0
    %13 = vsyncpa [#allocation5], 0
    %14 = vsyncpa [#allocation10], 0
    // Predicated region
    $region2: #{tpu_custom_call.1} parent=1 // pred_check
      _
    $region3: #{tpu_custom_call.1} parent=1 // pred_check_branch
      %16 = sbr.rel (0) target = $region5
    $region4: #{tpu_custom_call.1} parent=1 // pred_region
      %s17 = sadd.s32 0, 0
      %s19 = ssub.s32 256, 256
      %20 = vsyncadd [#allocation4], %s19
      %s21 = smul.addr %s17, 2
      %s22 = smul.addr %s21, 128
      %s23 = scalar_lea.hbm %s0, %s22
      %s25 = sshll.u32 [#allocation3], 4
      %s26 = int_to_ptr.vmem [resolvable:$true] %s25
      %28 = dma.hbm_to_vmem [thread:$0]  %s23, 256, %s26, [#allocation4]
    $region5: #{tpu_custom_call.1} parent=1 // pred_fallthru
      _
    // Predicated region
    $region6: #{tpu_custom_call.1} parent=1 // pred_check
      _
    $region7: #{tpu_custom_call.1} parent=1 // pred_check_branch
      %30 = sbr.rel (0) target = $region9
    $region8: #{tpu_custom_call.1} parent=1 // pred_region
      %s31 = sadd.s32 0, 0
      %s33 = ssub.s32 256, 256
      %34 = vsyncadd [#allocation7], %s33
      %s35 = smul.addr %s31, 2
      %s36 = smul.addr %s35, 128
      %s37 = scalar_lea.hbm %s1, %s36
      %s39 = sshll.u32 [#allocation6], 4
      %s40 = int_to_ptr.vmem [resolvable:$true] %s39
      %42 = dma.hbm_to_vmem [thread:$0]  %s37, 256, %s40, [#allocation7]
    $region9: #{tpu_custom_call.1} parent=1 // pred_fallthru
      _
    // Predicated region
    $region10: #{tpu_custom_call.1} parent=1 // pred_check
      _
    $region11: #{tpu_custom_call.1} parent=1 // pred_check_branch
      %44 = sbr.rel (0) target = $region13
    $region12: #{tpu_custom_call.1} parent=1 // pred_region
      _
    $region13: #{tpu_custom_call.1} parent=1 // pred_fallthru
      _
    // Predicated region
    $region14: #{tpu_custom_call.1} parent=1 // pred_check
      _
    $region15: #{tpu_custom_call.1} parent=1 // pred_check_branch
      %46 = sbr.rel (0) target = $region17
    $region16: #{tpu_custom_call.1} parent=1 // pred_region
      _
    $region17: #{tpu_custom_call.1} parent=1 // pred_fallthru
      _
    // Predicated region
    $region18: #{tpu_custom_call.1} parent=1 // pred_check
      _
    $region19: #{tpu_custom_call.1} parent=1 // pred_check_branch
      %48 = sbr.rel (0) target = $region21
    $region20: #{tpu_custom_call.1} parent=1 // pred_region
      %49 = dma.done [#allocation4], 256
    $region21: #{tpu_custom_call.1} parent=1 // pred_fallthru
      _
    // Predicated region
    $region22: #{tpu_custom_call.1} parent=1 // pred_check
      _
    $region23: #{tpu_custom_call.1} parent=1 // pred_check_branch
      %51 = sbr.rel (0) target = $region25
    $region24: #{tpu_custom_call.1} parent=1 // pred_region
      %52 = dma.done [#allocation7], 256
    $region25: #{tpu_custom_call.1} parent=1 // pred_fallthru
      _
    %s53 = sadd.s32 0, 0
    %s54 = sadd.s32 0, 0
    %p55 = scmp.eq.s32.totalorder 0, 0
    // Predicated region
    $region26: #{tpu_custom_call.1} parent=1 // pred_check
      %p56 = pneg %p55
    $region27: #{tpu_custom_call.1} parent=1 // pred_check_branch
      %58 = sbr.rel (%p56) target = $region29
    $region28: #{tpu_custom_call.1} parent=1 // pred_region
      %59 = vst [vmem:[#allocation2] sm:$0xff] 0.0
      %60 = vst [vmem:[#allocation2 + $0x8] sm:$0xff] 0.0
    $region29: #{tpu_custom_call.1} parent=1 // pred_fallthru
      _
    %v61 = vld [vmem:[#allocation3] sm:$0xff]
    %v62 = vld [vmem:[#allocation3 + $0x8] sm:$0xff]
    %v63 = vld [vmem:[#allocation6] sm:$0xff]
    %v64 = vld [vmem:[#allocation6 + $0x8] sm:$0xff]
    %v65 = vsub.f32 0.0, %v61
    %v66 = vsub.f32 0.0, %v62
    %v67 = vmul.f32 %v65, 1.442695
    %v68 = vpow.pop %v67
    %v69 = vmul.f32 %v66, 1.442695
    %v70 = vpow.pop %v69
    %v71 = vadd.f32 %v68, 1.0
    %v72 = vadd.f32 %v70, 1.0
    %v73 = vrcp.pop %v71
    %v74 = vmul.f32 1.0, %v73
    %v75 = vrcp.pop %v72
    %v76 = vmul.f32 1.0, %v75
    %v77 = vmax.f32 %v74, 0.0001
    %v78 = vmax.f32 %v76, 0.0001
    %v79 = vmin.f32 %v77, 0.9999
    %v80 = vmin.f32 %v78, 0.9999
    %v81 = vlog2.pop %v79
    %v82 = vmul.f32 %v81, 0.6931472
    %v83 = vlog2.pop %v80
    %v84 = vmul.f32 %v83, 0.6931472
    %v85 = vmul.f32 %v63, %v82
    %v86 = vmul.f32 %v64, %v84
    %v87 = vsub.f32 1.0, %v63
    %v88 = vsub.f32 1.0, %v64
    %v89 = vsub.f32 1.0, %v79
    %v90 = vsub.f32 1.0, %v80
    %v91 = vlog2.pop %v89
    %v92 = vmul.f32 %v91, 0.6931472
    %v93 = vlog2.pop %v90
    %v94 = vmul.f32 %v93, 0.6931472
    %v95 = vmul.f32 %v87, %v92
    %v96 = vmul.f32 %v88, %v94
    %v97 = vadd.f32 %v85, %v95
    %v98 = vadd.f32 %v86, %v96
    %v99 = vsub.f32 0.0, %v97
    %v100 = vsub.f32 0.0, %v98
    %s101 = sadd.s32 0, 0
    %s102 = smul.u32 %s101, 8
    %v103 = vlaneseq
    %v104 = vshrl.u32 %v103, 7
    %v105 = vstv %s102
    %v106 = vadd.s32 %v104, %v105
    %vm107 = vcmp.lt.s32.totalorder %v106, 2
    %v108 = vsel %vm107, %v99, 0.0
    %v109 = vsel %vm107, %v100, 0.0
    %v110 = vld [vmem:[#allocation2] sm:$0xff]
    %v111 = vld [vmem:[#allocation2 + $0x8] sm:$0xff]
    %v112 = vadd.f32 %v110, %v108
    %v113 = vadd.f32 %v111, %v109
    %114 = vst [vmem:[#allocation2] sm:$0xff] %v112
    %115 = vst [vmem:[#allocation2 + $0x8] sm:$0xff] %v113
    // Predicated region
    $region30: #{tpu_custom_call.1} parent=1 // pred_check
      %p116 = pneg %p55
    $region31: #{tpu_custom_call.1} parent=1 // pred_check_branch
      %118 = sbr.rel (%p116) target = $region33
    $region32: #{tpu_custom_call.1} parent=1 // pred_region
      %v119 = vld [vmem:[#allocation2] sm:$0xff]
      %v120 = vld [vmem:[#allocation2 + $0x8] sm:$0xff]
      %v121 = vadd.f32 %v119, %v120
      %122 = vadd.xlane.f32.xlu0 %v121
      %v123 = vpop.xlane.xlu0 %122
      %v124 = vrot.slane %v123, 4
      %v125 = vadd.f32 %v123, %v124
      %v126 = vrot.slane %v125, 2
      %v127 = vadd.f32 %v125, %v126
      %v128 = vrot.slane %v127, 1
      %v129 = vadd.f32 %v127, %v128
      %s130 = vtos %v129
      %v131 = vstv %s130
      %vm132 = vcmask 0
      %133 = vst.msk [vmem:[#allocation8] sm:$0x1] %vm132, %v131
      %v134 = vld [vmem:[%s2] sm:$0x3]
      %v135 = vld [vmem:[%s3] sm:$0x3]
      %v136 = vlog2.pop %v134
      %v137 = vmul.f32 %v136, 0.6931472
      %v138 = vmax.f32 %v137, -100.0
      %v139 = vsub.f32 1.0, %v134
      %v140 = vlog2.pop %v139
      %v141 = vmul.f32 %v140, 0.6931472
      %v142 = vmax.f32 %v141, -100.0
      %v143 = vmul.f32 %v135, %v138
      %v144 = vsub.f32 1.0, %v135
      %v145 = vmul.f32 %v144, %v142
      %v146 = vadd.f32 %v143, %v145
      %v147 = vsub.f32 0.0, %v146
      %vm148 = vcmask 1024
      %v149 = vsel %vm148, %v147, 0.0
      %150 = vadd.xlane.f32.xlu0 %v149
      %v151 = vpop.xlane.xlu0 %150
      %v152 = vrot.slane %v151, 4
      %v153 = vadd.f32 %v151, %v152
      %v154 = vrot.slane %v153, 2
      %v155 = vadd.f32 %v153, %v154
      %v156 = vrot.slane %v155, 1
      %v157 = vadd.f32 %v155, %v156
      %s158 = vtos %v157
      %v159 = vrcp.pop 2.0
      %s160 = vtos %v159
      %s161 = smul.f32 %s158, %s160
      %v162 = vstv %s161
      %163 = vst.msk [vmem:[#allocation9] sm:$0x1] %vm132, %v162
    $region33: #{tpu_custom_call.1} parent=1 // pred_fallthru
      _
    // Predicated region
    $region34: #{tpu_custom_call.1} parent=1 // pred_check
      _
    $region35: #{tpu_custom_call.1} parent=1 // pred_check_branch
      %165 = sbr.rel (0) target = $region37
    $region36: #{tpu_custom_call.1} parent=1 // pred_region
      %s167 = ssub.s32 16, 16
      %168 = vsyncadd [#allocation5], %s167
      %s170 = sshll.u32 [#allocation8], 4
      %s171 = int_to_ptr.vmem [resolvable:$true] %s170
      %173 = dma.vmem_to_hbm [thread:$0]  %s171, 16, %s4, [#allocation5]
    $region37: #{tpu_custom_call.1} parent=1 // pred_fallthru
      _
    // Predicated region
    $region38: #{tpu_custom_call.1} parent=1 // pred_check
      _
    $region39: #{tpu_custom_call.1} parent=1 // pred_check_branch
      %175 = sbr.rel (0) target = $region41
    $region40: #{tpu_custom_call.1} parent=1 // pred_region
      %s177 = ssub.s32 16, 16
      %178 = vsyncadd [#allocation10], %s177
      %s180 = sshll.u32 [#allocation9], 4
      %s181 = int_to_ptr.vmem [resolvable:$true] %s180
      %183 = dma.vmem_to_hbm [thread:$0]  %s181, 16, %s5, [#allocation10]
    $region41: #{tpu_custom_call.1} parent=1 // pred_fallthru
      _
    // Predicated region
    $region42: #{tpu_custom_call.1} parent=1 // pred_check
      _
    $region43: #{tpu_custom_call.1} parent=1 // pred_check_branch
      %185 = sbr.rel (0) target = $region45
    $region44: #{tpu_custom_call.1} parent=1 // pred_region
      %186 = dma.done [#allocation5], 16
    $region45: #{tpu_custom_call.1} parent=1 // pred_fallthru
      _
    // Predicated region
    $region46: #{tpu_custom_call.1} parent=1 // pred_check
      _
    $region47: #{tpu_custom_call.1} parent=1 // pred_check_branch
      %188 = sbr.rel (0) target = $region49
    $region48: #{tpu_custom_call.1} parent=1 // pred_region
      %189 = dma.done [#allocation10], 16
    $region49: #{tpu_custom_call.1} parent=1 // pred_fallthru
      _
    %190 = vsyncpa [#allocation4], 1
    %191 = vsyncpa [#allocation7], 1
    %192 = vsyncpa [#allocation5], 1
    %193 = vsyncpa [#allocation10], 1

</llo_original>
